<compile_context>
chip_gen: v6e
topology: v6e:2x2x1
jax: 0.10.0
libtpu: 0.0.40
codegen_flags: <defaults>
</compile_context>

<pallas_src>
import math

import jax
import jax.numpy as jnp
from jax.experimental import pallas as pl
from jax.experimental.pallas import tpu as pltpu


HIDDEN = 256


def _critic_kernel(s_ref, a_ref, w1s_ref, w1a_ref, b1_ref, w2_ref, b2_ref,
                   w3_ref, b3_ref, out_ref):
    # Layer 1 with the concat fused: [TB,sd]@[sd,256] + [TB,ad]@[ad,256]  (MXU).
    h1 = jnp.dot(s_ref[...], w1s_ref[...], preferred_element_type=jnp.float32)
    h1 = h1 + jnp.dot(a_ref[...], w1a_ref[...], preferred_element_type=jnp.float32)
    h1 = jnp.maximum(h1 + b1_ref[...], 0.0)

    # Layer 2: [TB,256]@[256,256] (MXU), bias + ReLU on the VPU (f32).
    h2 = jnp.dot(h1.astype(w2_ref.dtype), w2_ref[...],
                 preferred_element_type=jnp.float32)
    h2 = jnp.maximum(h2 + b2_ref[...], 0.0)

    # Layer 3: dense [1,256] row -> elementwise multiply + lane reduction.
    # Keeps the MXU free and avoids a lane-sparse [256,1] operand.
    q = jnp.sum(h2 * w3_ref[...], axis=-1, keepdims=True) + b3_ref[0, 0]
    out_ref[...] = q.astype(out_ref.dtype)


def _pick_batch_tile(B):
    """Batch (M) tile: 256-aligned for v6e/v7x MXU, 128 for mid sizes, and a
    single sublane-aligned block for tiny batches."""
    if B <= 128:
        return max(8, ((B + 7) // 8) * 8)   # one full-batch block, multiple of 8
    if B < 256:
        return 128                          # maps cleanly to v5e's 4x128^2 MXU
    for tb in (1024, 512, 256):
        if B % tb == 0:
            return tb                       # <~3 MiB VMEM even at 1024 -> fits v7x
    return 256                              # ragged large batch: pad to 256


def critic_forward(state, action, params, compute_dtype=None):
    """Equivalent of Critic.forward(state, action)."""
    w1s, w1a, b1, w2, b2, w3, b3 = params
    if compute_dtype is not None:
        # bf16 matmul inputs (f32 accumulation in-kernel) for v6e/v7x throughput.
        state = state.astype(compute_dtype)
        action = action.astype(compute_dtype)
        w1s, w1a, w2 = (w.astype(compute_dtype) for w in (w1s, w1a, w2))

    B, sd = state.shape
    ad = action.shape[1]

    tb = _pick_batch_tile(B)
    pad = (-B) % tb
    if pad:
        state = jnp.pad(state, ((0, pad), (0, 0)))
        action = jnp.pad(action, ((0, pad), (0, 0)))
    Bp = B + pad
    grid = (Bp // tb,)

    # Weights/biases: same block for every grid step -> stay resident in VMEM.
    resident = lambda shape: pl.BlockSpec(shape, lambda i: (0, 0))

    flops = 2 * Bp * HIDDEN * (sd + ad + HIDDEN + 1)
    bytes_accessed = 4 * (Bp * (sd + ad + 1)
                          + (sd + ad + 1) * HIDDEN
                          + HIDDEN * (HIDDEN + 2) + 1)

    out = pl.pallas_call(
        _critic_kernel,
        out_shape=jax.ShapeDtypeStruct((Bp, 1), jnp.float32),
        grid=grid,
        in_specs=[
            pl.BlockSpec((tb, sd), lambda i: (i, 0)),            # state tile
            pl.BlockSpec((tb, ad), lambda i: (i, 0)),            # action tile
            resident((sd, HIDDEN)),                              # W1[:sd, :]
            resident((ad, HIDDEN)),                              # W1[sd:, :]
            resident((1, HIDDEN)),                               # b1
            resident((HIDDEN, HIDDEN)),                          # W2
            resident((1, HIDDEN)),                               # b2
            resident((1, HIDDEN)),                               # w3 row
            pl.BlockSpec(memory_space=pltpu.MemorySpace.SMEM),   # b3 scalar
        ],
        out_specs=pl.BlockSpec((tb, 1), lambda i: (i, 0)),
        compiler_params=pltpu.CompilerParams(
            dimension_semantics=("parallel",)),
        cost_estimate=pl.CostEstimate(
            flops=flops, transcendentals=0, bytes_accessed=bytes_accessed),
    )(state, action, w1s, w1a, b1, w2, b2, w3, b3)

    return out[:B] if pad else out


def init_critic_params(key, state_dim, action_dim):
    """PyTorch nn.Linear-style init (U[-1/sqrt(fan_in), +1/sqrt(fan_in)]).

    Kernel-friendly layout:
      w1_state [sd,256], w1_action [ad,256]  (rows of W1^T, pre-split)
      b1 [1,256], w2 [256,256] (W2^T), b2 [1,256]
      w3 [1,256] (Linear(256,1).weight row), b3 [1,1]
    """
    in_dim = state_dim + action_dim
    k = jax.random.split(key, 6)
    bound1 = 1.0 / math.sqrt(in_dim)
    bound2 = 1.0 / math.sqrt(HIDDEN)
    u = lambda kk, shp, b: jax.random.uniform(kk, shp, jnp.float32, -b, b)

    w1_full = u(k[0], (in_dim, HIDDEN), bound1)
    w1s, w1a = w1_full[:state_dim], w1_full[state_dim:]
    b1 = u(k[1], (1, HIDDEN), bound1)
    w2 = u(k[2], (HIDDEN, HIDDEN), bound2)
    b2 = u(k[3], (1, HIDDEN), bound2)
    w3 = u(k[4], (1, HIDDEN), bound2)
    b3 = u(k[5], (1, 1), bound2)
    return (w1s, w1a, b1, w2, b2, w3, b3)


def critic_reference(state, action, params):
    """Pure-JAX reference for correctness checking."""
    w1s, w1a, b1, w2, b2, w3, b3 = params
    sa = jnp.concatenate([state, action], axis=1)
    w1 = jnp.concatenate([w1s, w1a], axis=0)
    h1 = jnp.maximum(sa @ w1 + b1, 0.0)
    h2 = jnp.maximum(h1 @ w2 + b2, 0.0)
    return h2 @ w3.T + b3


if __name__ == "__main__":
    key = jax.random.PRNGKey(0)
    state_dim, action_dim = 24, 8
    params = init_critic_params(jax.random.PRNGKey(1), state_dim, action_dim)

    # Small-batch case (single block).
    batch = 8
    key, ks, ka = jax.random.split(key, 3)
    state = jax.random.normal(ks, (batch, state_dim), jnp.float32)
    action = jax.random.normal(ka, (batch, action_dim), jnp.float32)

    q = jax.block_until_ready(critic_forward(state, action, params))
    q_ref = critic_reference(state, action, params)
    assert q.shape == (batch, 1)
    assert jnp.allclose(q, q_ref, atol=1e-4, rtol=1e-4), "mismatch vs reference (B=8)"

    # Tiled + ragged-padding case (grid > 1) to validate the batch tiling path.
    batch2 = 300
    key, ks2, ka2 = jax.random.split(key, 3)
    state2 = jax.random.normal(ks2, (batch2, state_dim), jnp.float32)
    action2 = jax.random.normal(ka2, (batch2, action_dim), jnp.float32)

    q2 = jax.block_until_ready(critic_forward(state2, action2, params))
    q2_ref = critic_reference(state2, action2, params)
    assert q2.shape == (batch2, 1)
    assert jnp.allclose(q2, q2_ref, atol=1e-4, rtol=1e-4), "mismatch vs reference (B=300)"

    print("KERNEL_OK")
</pallas_src>

<mosaic_0001>
module attributes {stable_mosaic.version = 11 : i64} {
  func.func @_critic_kernel(%arg0: i32, %arg1: memref<8x24xf32, #tpu.memory_space<vmem>>, %arg2: memref<8x8xf32, #tpu.memory_space<vmem>>, %arg3: memref<24x256xf32, #tpu.memory_space<vmem>>, %arg4: memref<8x256xf32, #tpu.memory_space<vmem>>, %arg5: memref<1x256xf32, #tpu.memory_space<vmem>>, %arg6: memref<256x256xf32, #tpu.memory_space<vmem>>, %arg7: memref<1x256xf32, #tpu.memory_space<vmem>>, %arg8: memref<1x256xf32, #tpu.memory_space<vmem>>, %arg9: memref<1x1xf32, #tpu.memory_space<smem>>, %arg10: memref<8x1xf32, #tpu.memory_space<vmem>>) attributes {dimension_semantics = [#tpu.dimension_semantics<parallel>], iteration_bounds = array<i64: 1>, scalar_prefetch = 0 : i64, scratch_operands = 0 : i64, tpu.core_type = #tpu.core_type<tc>, window_params = [{transform_indices = @transform_0, window_bounds = array<i64: 8, 24>}, {transform_indices = @transform_1, window_bounds = array<i64: 8, 8>}, {pipeline_mode = #tpu.pipeline_mode<synchronous>, transform_indices = @transform_2, window_bounds = array<i64: 24, 256>}, {pipeline_mode = #tpu.pipeline_mode<synchronous>, transform_indices = @transform_3, window_bounds = array<i64: 8, 256>}, {pipeline_mode = #tpu.pipeline_mode<synchronous>, transform_indices = @transform_4, window_bounds = array<i64: 1, 256>}, {pipeline_mode = #tpu.pipeline_mode<synchronous>, transform_indices = @transform_5, window_bounds = array<i64: 256, 256>}, {pipeline_mode = #tpu.pipeline_mode<synchronous>, transform_indices = @transform_6, window_bounds = array<i64: 1, 256>}, {pipeline_mode = #tpu.pipeline_mode<synchronous>, transform_indices = @transform_7, window_bounds = array<i64: 1, 256>}, {transform_indices = @transform_8, window_bounds = array<i64: 1, 1>}, {transform_indices = @transform_9, window_bounds = array<i64: 8, 1>}]} {
    %c0 = arith.constant 0 : index
    %c0_0 = arith.constant 0 : index
    %0 = vector.load %arg1[%c0, %c0_0] : memref<8x24xf32, #tpu.memory_space<vmem>>, vector<8x24xf32>
    %c0_1 = arith.constant 0 : index
    %c0_2 = arith.constant 0 : index
    %1 = vector.load %arg3[%c0_1, %c0_2] : memref<24x256xf32, #tpu.memory_space<vmem>>, vector<24x256xf32>
    %cst = arith.constant dense<0.000000e+00> : vector<8x256xf32>
    %2 = tpu.matmul %0, %1, %cst {dimension_numbers = #tpu.dot_dimension_numbers<[1], [0], [0], [1], [0, 0, 1, 1], [], []>} : vector<8x24xf32>, vector<24x256xf32>, vector<8x256xf32> -> vector<8x256xf32>
    %c0_3 = arith.constant 0 : index
    %c0_4 = arith.constant 0 : index
    %3 = vector.load %arg2[%c0_3, %c0_4] : memref<8x8xf32, #tpu.memory_space<vmem>>, vector<8x8xf32>
    %c0_5 = arith.constant 0 : index
    %c0_6 = arith.constant 0 : index
    %4 = vector.load %arg4[%c0_5, %c0_6] : memref<8x256xf32, #tpu.memory_space<vmem>>, vector<8x256xf32>
    %cst_7 = arith.constant dense<0.000000e+00> : vector<8x256xf32>
    %5 = tpu.matmul %3, %4, %cst_7 {dimension_numbers = #tpu.dot_dimension_numbers<[1], [0], [0], [1], [0, 0, 1, 1], [], []>} : vector<8x8xf32>, vector<8x256xf32>, vector<8x256xf32> -> vector<8x256xf32>
    %6 = arith.addf %2, %5 : vector<8x256xf32>
    %c0_8 = arith.constant 0 : index
    %c0_9 = arith.constant 0 : index
    %7 = vector.load %arg5[%c0_8, %c0_9] : memref<1x256xf32, #tpu.memory_space<vmem>>, vector<1x256xf32>
    %8 = vector.broadcast %7 : vector<1x256xf32> to vector<8x256xf32>
    %9 = arith.addf %6, %8 : vector<8x256xf32>
    %cst_10 = arith.constant 0.000000e+00 : f32
    %10 = vector.broadcast %cst_10 : f32 to vector<8x256xf32>
    %11 = arith.maximumf %9, %10 : vector<8x256xf32>
    %c0_11 = arith.constant 0 : index
    %c0_12 = arith.constant 0 : index
    %12 = vector.load %arg6[%c0_11, %c0_12] : memref<256x256xf32, #tpu.memory_space<vmem>>, vector<256x256xf32>
    %cst_13 = arith.constant dense<0.000000e+00> : vector<8x256xf32>
    %13 = tpu.matmul %11, %12, %cst_13 {dimension_numbers = #tpu.dot_dimension_numbers<[1], [0], [0], [1], [0, 0, 1, 1], [], []>} : vector<8x256xf32>, vector<256x256xf32>, vector<8x256xf32> -> vector<8x256xf32>
    %c0_14 = arith.constant 0 : index
    %c0_15 = arith.constant 0 : index
    %14 = vector.load %arg7[%c0_14, %c0_15] : memref<1x256xf32, #tpu.memory_space<vmem>>, vector<1x256xf32>
    %15 = vector.broadcast %14 : vector<1x256xf32> to vector<8x256xf32>
    %16 = arith.addf %13, %15 : vector<8x256xf32>
    %cst_16 = arith.constant 0.000000e+00 : f32
    %17 = vector.broadcast %cst_16 : f32 to vector<8x256xf32>
    %18 = arith.maximumf %16, %17 : vector<8x256xf32>
    %c0_17 = arith.constant 0 : index
    %c0_18 = arith.constant 0 : index
    %19 = vector.load %arg8[%c0_17, %c0_18] : memref<1x256xf32, #tpu.memory_space<vmem>>, vector<1x256xf32>
    %20 = vector.broadcast %19 : vector<1x256xf32> to vector<8x256xf32>
    %21 = arith.mulf %18, %20 : vector<8x256xf32>
    %cst_19 = arith.constant dense<0.000000e+00> : vector<8xf32>
    %22 = vector.multi_reduction <add>, %21, %cst_19 [1] : vector<8x256xf32> to vector<8xf32>
    %23 = vector.shape_cast %22 : vector<8xf32> to vector<8x1xf32>
    %c0_20 = arith.constant 0 : index
    %c0_21 = arith.constant 0 : index
    %24 = memref.load %arg9[%c0_20, %c0_21] : memref<1x1xf32, #tpu.memory_space<smem>>
    %25 = vector.broadcast %24 : f32 to vector<8x1xf32>
    %26 = arith.addf %23, %25 : vector<8x1xf32>
    %c0_22 = arith.constant 0 : index
    %c0_23 = arith.constant 0 : index
    %27 = vector.load %arg10[%c0_22, %c0_23] : memref<8x1xf32, #tpu.memory_space<vmem>>, vector<8x1xf32>
    tpu.vector_store %arg10[%c0_22, %c0_23], %26 {strides = array<i32>} : memref<8x1xf32, #tpu.memory_space<vmem>>, vector<8x1xf32>,
    return
  }
  func.func @transform_0(%arg0: i32) -> (i32, i32) {
    %c0_i32 = arith.constant 0 : i32
    %c0_i32_0 = arith.constant 0 : i32
    return %arg0, %c0_i32 : i32, i32
  }
  func.func @transform_1(%arg0: i32) -> (i32, i32) {
    %c0_i32 = arith.constant 0 : i32
    %c0_i32_0 = arith.constant 0 : i32
    return %arg0, %c0_i32 : i32, i32
  }
  func.func @transform_2(%arg0: i32) -> (i32, i32) {
    %c0_i32 = arith.constant 0 : i32
    %c0_i32_0 = arith.constant 0 : i32
    %c0_i32_1 = arith.constant 0 : i32
    return %c0_i32, %c0_i32_0 : i32, i32
  }
  func.func @transform_3(%arg0: i32) -> (i32, i32) {
    %c0_i32 = arith.constant 0 : i32
    %c0_i32_0 = arith.constant 0 : i32
    %c0_i32_1 = arith.constant 0 : i32
    return %c0_i32, %c0_i32_0 : i32, i32
  }
  func.func @transform_4(%arg0: i32) -> (i32, i32) {
    %c0_i32 = arith.constant 0 : i32
    %c0_i32_0 = arith.constant 0 : i32
    %c0_i32_1 = arith.constant 0 : i32
    return %c0_i32, %c0_i32_0 : i32, i32
  }
  func.func @transform_5(%arg0: i32) -> (i32, i32) {
    %c0_i32 = arith.constant 0 : i32
    %c0_i32_0 = arith.constant 0 : i32
    %c0_i32_1 = arith.constant 0 : i32
    return %c0_i32, %c0_i32_0 : i32, i32
  }
  func.func @transform_6(%arg0: i32) -> (i32, i32) {
    %c0_i32 = arith.constant 0 : i32
    %c0_i32_0 = arith.constant 0 : i32
    %c0_i32_1 = arith.constant 0 : i32
    return %c0_i32, %c0_i32_0 : i32, i32
  }
  func.func @transform_7(%arg0: i32) -> (i32, i32) {
    %c0_i32 = arith.constant 0 : i32
    %c0_i32_0 = arith.constant 0 : i32
    %c0_i32_1 = arith.constant 0 : i32
    return %c0_i32, %c0_i32_0 : i32, i32
  }
  func.func @transform_8(%arg0: i32) -> (i32, i32) {
    %c0_i32 = arith.constant 0 : i32
    %c0_i32_0 = arith.constant 0 : i32
    %c0_i32_1 = arith.constant 0 : i32
    return %c0_i32, %c0_i32_0 : i32, i32
  }
  func.func @transform_9(%arg0: i32) -> (i32, i32) {
    %c0_i32 = arith.constant 0 : i32
    %c0_i32_0 = arith.constant 0 : i32
    return %arg0, %c0_i32 : i32, i32
  }
}

</mosaic_0001>

<llo_original>
// kernel: tpu_custom_call.1
$region0: #{tpu_custom_call.1}
  #allocation0 [shape = 'u32[]', space=smem, size = 0x4, offset = 0x4, fixed_abs, tag = 'smem constant byte address 0x4 - core index']
  #allocation1 [shape = 'u32[144,128]{1,0:T(1,128)}', space=vmem, size = 0x12000, scoped, tag = 'internal scratch']
  #allocation2 [shape = 'f32[1,1]{1,0:T(1,128)S(6)}', space=smem, size = 0x200, scoped, tag = 'scoped memory for tpu_custom_call.1']
  %s0 = inlined_call_operand.hbm [shape: f32[8,24], index: 0, kind: input, shape index: {}]
  %s1 = inlined_call_operand.hbm [shape: f32[8,8], index: 1, kind: input, shape index: {}]
  %s2 = inlined_call_operand.hbm [shape: f32[24,256], index: 2, kind: input, shape index: {}]
  %s3 = inlined_call_operand.hbm [shape: f32[8,256], index: 3, kind: input, shape index: {}]
  %s4 = inlined_call_operand.vmem [shape: f32[1,256], index: 4, kind: input, shape index: {}]
  %s5 = inlined_call_operand.hbm [shape: f32[256,256], index: 5, kind: input, shape index: {}]
  %s6 = inlined_call_operand.vmem [shape: f32[1,256], index: 6, kind: input, shape index: {}]
  %s7 = inlined_call_operand.vmem [shape: f32[1,256], index: 7, kind: input, shape index: {}]
  %s8 = inlined_call_operand.<no memory space> [shape: f32[1,1], index: 8, kind: input, shape index: {}]
  %s9 = inlined_call_operand.vmem [shape: f32[8,1], index: 9, kind: output, shape index: {}]
  %s10 = sld [smem:[#allocation0]]
  $region66: #{tpu_custom_call.1} parent=0
    _
  %s12 = ssub.s32 1, %s10
  %s13 = scalar_select 0, %s12, %s10
  %14 = sst [smem:[#allocation2]] %s8
  $region1: #{tpu_custom_call.1} parent=0
    #allocation3 [shape = 'u8[4096]{0}', space=vmem, size = 0x1000, scoped, tag = 'input window, operand 0, single buffered']
    #allocation4 [shape = 's32[1]{0}', space=sflag, size = 0x4, scoped, tag = 'scoped memory for tpu_custom_call.1']
    #allocation5 [shape = 'u8[4096]{0}', space=vmem, size = 0x1000, scoped, tag = 'input window, operand 1, single buffered']
    #allocation6 [shape = 's32[1]{0}', space=sflag, size = 0x4, scoped, tag = 'scoped memory for tpu_custom_call.1']
    #allocation7 [shape = 'u8[24576]{0}', space=vmem, size = 0x6000, scoped, tag = 'input window, operand 2, single buffered']
    #allocation8 [shape = 'u8[8192]{0}', space=vmem, size = 0x2000, scoped, tag = 'input window, operand 3, single buffered']
    #allocation9 [shape = 's32[1]{0}', space=sflag, size = 0x4, scoped, tag = 'scoped memory for tpu_custom_call.1']
    #allocation10 [shape = 'u8[262144]{0}', space=vmem, size = 0x40000, scoped, tag = 'input window, operand 5, single buffered']
    %15 = vsyncpa [#allocation4], 0
    %16 = vsyncpa [#allocation6], 0
    %17 = vsyncpa [#allocation9], 0
    // Predicated region
    $region2: #{tpu_custom_call.1} parent=1 // pred_check
      _
    $region3: #{tpu_custom_call.1} parent=1 // pred_check_branch
      %19 = sbr.rel (0) target = $region5
    $region4: #{tpu_custom_call.1} parent=1 // pred_region
      %s21 = ssub.s32 128, 128
      %22 = vsyncadd [#allocation4], %s21
      %s24 = sshll.u32 [#allocation3], 4
      %s25 = int_to_ptr.vmem [resolvable:$true] %s24
      %27 = dma.hbm_to_vmem [thread:$0]  %s0, 128, %s25, [#allocation4]
    $region5: #{tpu_custom_call.1} parent=1 // pred_fallthru
      _
    // Predicated region
    $region6: #{tpu_custom_call.1} parent=1 // pred_check
      _
    $region7: #{tpu_custom_call.1} parent=1 // pred_check_branch
      %29 = sbr.rel (0) target = $region9
    $region8: #{tpu_custom_call.1} parent=1 // pred_region
      %s31 = ssub.s32 128, 128
      %32 = vsyncadd [#allocation6], %s31
      %s34 = sshll.u32 [#allocation5], 4
      %s35 = int_to_ptr.vmem [resolvable:$true] %s34
      %37 = dma.hbm_to_vmem [thread:$0]  %s1, 128, %s35, [#allocation6]
    $region9: #{tpu_custom_call.1} parent=1 // pred_fallthru
      _
    // Predicated region
    $region10: #{tpu_custom_call.1} parent=1 // pred_check
      _
    $region11: #{tpu_custom_call.1} parent=1 // pred_check_branch
      %39 = sbr.rel (0) target = $region13
    $region12: #{tpu_custom_call.1} parent=1 // pred_region
      %s41 = ssub.s32 768, 768
      %42 = vsyncadd [#allocation6], %s41
      %s43 = sshll.u32 [#allocation7], 4
      %s44 = int_to_ptr.vmem [resolvable:$true] %s43
      %49 = dma.hbm_to_vmem [thread:$0]  %s2, 768, %s44, [#allocation6], 256, 256, 16
    $region13: #{tpu_custom_call.1} parent=1 // pred_fallthru
      _
    // Predicated region
    $region14: #{tpu_custom_call.1} parent=1 // pred_check
      _
    $region15: #{tpu_custom_call.1} parent=1 // pred_check_branch
      %51 = sbr.rel (0) target = $region17
    $region16: #{tpu_custom_call.1} parent=1 // pred_region
      %s53 = ssub.s32 256, 256
      %54 = vsyncadd [#allocation9], %s53
      %s56 = sshll.u32 [#allocation8], 4
      %s57 = int_to_ptr.vmem [resolvable:$true] %s56
      %59 = dma.hbm_to_vmem [thread:$0]  %s3, 256, %s57, [#allocation9]
    $region17: #{tpu_custom_call.1} parent=1 // pred_fallthru
      _
    // Predicated region
    $region18: #{tpu_custom_call.1} parent=1 // pred_check
      _
    $region19: #{tpu_custom_call.1} parent=1 // pred_check_branch
      %61 = sbr.rel (0) target = $region21
    $region20: #{tpu_custom_call.1} parent=1 // pred_region
      _
    $region21: #{tpu_custom_call.1} parent=1 // pred_fallthru
      _
    // Predicated region
    $region22: #{tpu_custom_call.1} parent=1 // pred_check
      _
    $region23: #{tpu_custom_call.1} parent=1 // pred_check_branch
      %63 = sbr.rel (0) target = $region25
    $region24: #{tpu_custom_call.1} parent=1 // pred_region
      %s65 = ssub.s32 8192, 8192
      %66 = vsyncadd [#allocation9], %s65
      %s67 = sshll.u32 [#allocation10], 4
      %s68 = int_to_ptr.vmem [resolvable:$true] %s67
      %73 = dma.hbm_to_vmem [thread:$0]  %s5, 8192, %s68, [#allocation9], 256, 256, 16
    $region25: #{tpu_custom_call.1} parent=1 // pred_fallthru
      _
    // Predicated region
    $region26: #{tpu_custom_call.1} parent=1 // pred_check
      _
    $region27: #{tpu_custom_call.1} parent=1 // pred_check_branch
      %75 = sbr.rel (0) target = $region29
    $region28: #{tpu_custom_call.1} parent=1 // pred_region
      _
    $region29: #{tpu_custom_call.1} parent=1 // pred_fallthru
      _
    // Predicated region
    $region30: #{tpu_custom_call.1} parent=1 // pred_check
      _
    $region31: #{tpu_custom_call.1} parent=1 // pred_check_branch
      %77 = sbr.rel (0) target = $region33
    $region32: #{tpu_custom_call.1} parent=1 // pred_region
      _
    $region33: #{tpu_custom_call.1} parent=1 // pred_fallthru
      _
    // Predicated region
    $region34: #{tpu_custom_call.1} parent=1 // pred_check
      _
    $region35: #{tpu_custom_call.1} parent=1 // pred_check_branch
      %79 = sbr.rel (0) target = $region37
    $region36: #{tpu_custom_call.1} parent=1 // pred_region
      _
    $region37: #{tpu_custom_call.1} parent=1 // pred_fallthru
      _
    // Predicated region
    $region38: #{tpu_custom_call.1} parent=1 // pred_check
      _
    $region39: #{tpu_custom_call.1} parent=1 // pred_check_branch
      %81 = sbr.rel (0) target = $region41
    $region40: #{tpu_custom_call.1} parent=1 // pred_region
      %82 = dma.done [#allocation4], 128
    $region41: #{tpu_custom_call.1} parent=1 // pred_fallthru
      _
    // Predicated region
    $region42: #{tpu_custom_call.1} parent=1 // pred_check
      _
    $region43: #{tpu_custom_call.1} parent=1 // pred_check_branch
      %84 = sbr.rel (0) target = $region45
    $region44: #{tpu_custom_call.1} parent=1 // pred_region
      %85 = dma.done [#allocation6], 128
    $region45: #{tpu_custom_call.1} parent=1 // pred_fallthru
      _
    // Predicated region
    $region46: #{tpu_custom_call.1} parent=1 // pred_check
      _
    $region47: #{tpu_custom_call.1} parent=1 // pred_check_branch
      %87 = sbr.rel (0) target = $region49
    $region48: #{tpu_custom_call.1} parent=1 // pred_region
      %88 = dma.done [#allocation6], 768
    $region49: #{tpu_custom_call.1} parent=1 // pred_fallthru
      _
    // Predicated region
    $region50: #{tpu_custom_call.1} parent=1 // pred_check
      _
    $region51: #{tpu_custom_call.1} parent=1 // pred_check_branch
      %90 = sbr.rel (0) target = $region53
    $region52: #{tpu_custom_call.1} parent=1 // pred_region
      %91 = dma.done [#allocation9], 256
    $region53: #{tpu_custom_call.1} parent=1 // pred_fallthru
      _
    // Predicated region
    $region54: #{tpu_custom_call.1} parent=1 // pred_check
      _
    $region55: #{tpu_custom_call.1} parent=1 // pred_check_branch
      %93 = sbr.rel (0) target = $region57
    $region56: #{tpu_custom_call.1} parent=1 // pred_region
      %94 = dma.done [#allocation9], 8192
    $region57: #{tpu_custom_call.1} parent=1 // pred_fallthru
      _
    %v95 = vld [vmem:[#allocation3] sm:$0xff]
    %v96 = vld [vmem:[#allocation7] sm:$0xff]
    %v97 = vld [vmem:[#allocation7 + $0x8] sm:$0xff]
    %v98 = vld [vmem:[#allocation7 + $0x10] sm:$0xff]
    %v99 = vld [vmem:[#allocation7 + $0x18] sm:$0xff]
    %v100 = vld [vmem:[#allocation7 + $0x20] sm:$0xff]
    %v101 = vld [vmem:[#allocation7 + $0x28] sm:$0xff]
    %v102 = vld [vmem:[#allocation5] sm:$0xff]
    %v103 = vld [vmem:[#allocation8] sm:$0xff]
    %v104 = vld [vmem:[#allocation8 + $0x8] sm:$0xff]
    %vm105 = vcmask 64512
    %v107 = vsel %vm105, %v102, 0
    %109 = vmatprep.subr.mxu0 0.0
    %110 = vmatpush1.msra.mxu0 0.0
    %111 = vmatprep.subr.mxu0 0.0
    %112 = vmatpush1.msra.mxu0 0.0
    %113 = vmatprep.subr.mxu0 0.0
    %114 = vmatpush1.msra.mxu0 0.0
    %115 = vmatprep.subr.mxu0 0.0
    %116 = vmatpush1.msra.mxu0 0.0
    %117 = vmatprep.subr.mxu0 0.0
    %118 = vmatpush1.msra.mxu0 0.0
    %119 = vmatprep.subr.mxu0 0.0
    %120 = vmatpush1.msra.mxu0 0.0
    %121 = vmatprep.subr.mxu0 0.0
    %122 = vmatpush1.msra.mxu0 0.0
    %123 = vmatprep.subr.mxu0 0.0
    %124 = vmatpush1.msra.mxu0 0.0
    %125 = vmatprep.subr.mxu0 0.0
    %126 = vmatpush1.msra.mxu0 0.0
    %127 = vmatprep.subr.mxu0 0.0
    %128 = vmatpush1.msra.mxu0 0.0
    %129 = vmatprep.subr.mxu0 0.0
    %130 = vmatpush1.msra.mxu0 0.0
    %131 = vmatprep.subr.mxu0 0.0
    %132 = vmatpush1.msra.mxu0 0.0
    %133 = vmatprep.subr.mxu0 0.0
    %134 = vmatpush1.msra.mxu0 0.0
    %135 = vmatprep.subr.mxu0 0.0
    %136 = vmatpush1.msra.mxu0 0.0
    %137 = vmatprep.subr.mxu0 0.0
    %138 = vmatpush1.msra.mxu0 0.0
    %139 = vmatprep.subr.mxu0 %v104
    %140 = vmatpush1.msra.mxu0 %v103
    %141 = vmatprep.subr.mxu0 0.0
    %142 = vmatpush2.msra.mxu0 0.0
    %143 = vmatprep.subr.mxu0 0.0
    %144 = vmatpush2.msra.mxu0 0.0
    %145 = vmatprep.subr.mxu0 0.0
    %146 = vmatpush2.msra.mxu0 0.0
    %147 = vmatprep.subr.mxu0 0.0
    %148 = vmatpush2.msra.mxu0 0.0
    %149 = vmatprep.subr.mxu0 0.0
    %150 = vmatpush2.msra.mxu0 0.0
    %151 = vmatprep.subr.mxu0 0.0
    %152 = vmatpush2.msra.mxu0 0.0
    %153 = vmatprep.subr.mxu0 0.0
    %154 = vmatpush2.msra.mxu0 0.0
    %155 = vmatprep.subr.mxu0 0.0
    %156 = vmatpush2.msra.mxu0 0.0
    %157 = vmatprep.subr.mxu0 0.0
    %158 = vmatpush2.msra.mxu0 0.0
    %159 = vmatprep.subr.mxu0 0.0
    %160 = vmatpush2.msra.mxu0 0.0
    %161 = vmatprep.subr.mxu0 0.0
    %162 = vmatpush2.msra.mxu0 0.0
    %163 = vmatprep.subr.mxu0 0.0
    %164 = vmatpush2.msra.mxu0 0.0
    %165 = vmatprep.subr.mxu0 0.0
    %166 = vmatpush2.msra.mxu0 0.0
    %167 = vmatprep.subr.mxu0 0.0
    %168 = vmatpush2.msra.mxu0 0.0
    %169 = vmatprep.subr.mxu0 0.0
    %170 = vmatpush2.msra.mxu0 0.0
    %171 = vmatprep.subr.mxu0 0.0
    %172 = vmatpush2.msra.mxu0 0.0
    %173 = vmatprep.mubr.f32.mxu0 0.0
    %174 = vmatmul.mubr.f32.gmra.mxu0 %v107
    %v175 = vpop.f32.mrf.mxu0
    %v176 = vadd.f32 0.0, %v175
    %v177 = vpop.f32.mrf.mxu0
    %v178 = vadd.f32 0.0, %v177
    %179 = vdwg.mxu0
    %vm180 = vcmask 195584
    %v182 = vsel %vm180, %v95, 0
    %184 = vmatprep.subr.mxu0 0.0
    %185 = vmatpush1.msra.mxu0 0.0
    %186 = vmatprep.subr.mxu0 0.0
    %187 = vmatpush1.msra.mxu0 0.0
    %188 = vmatprep.subr.mxu0 0.0
    %189 = vmatpush1.msra.mxu0 0.0
    %190 = vmatprep.subr.mxu0 0.0
    %191 = vmatpush1.msra.mxu0 0.0
    %192 = vmatprep.subr.mxu0 0.0
    %193 = vmatpush1.msra.mxu0 0.0
    %194 = vmatprep.subr.mxu0 0.0
    %195 = vmatpush1.msra.mxu0 0.0
    %196 = vmatprep.subr.mxu0 0.0
    %197 = vmatpush1.msra.mxu0 0.0
    %198 = vmatprep.subr.mxu0 0.0
    %199 = vmatpush1.msra.mxu0 0.0
    %200 = vmatprep.subr.mxu0 0.0
    %201 = vmatpush1.msra.mxu0 0.0
    %202 = vmatprep.subr.mxu0 0.0
    %203 = vmatpush1.msra.mxu0 0.0
    %204 = vmatprep.subr.mxu0 0.0
    %205 = vmatpush1.msra.mxu0 0.0
    %206 = vmatprep.subr.mxu0 0.0
    %207 = vmatpush1.msra.mxu0 0.0
    %208 = vmatprep.subr.mxu0 0.0
    %209 = vmatpush1.msra.mxu0 0.0
    %210 = vmatprep.subr.mxu0 %v101
    %211 = vmatpush1.msra.mxu0 %v100
    %212 = vmatprep.subr.mxu0 %v99
    %213 = vmatpush1.msra.mxu0 %v98
    %214 = vmatprep.subr.mxu0 %v97
    %215 = vmatpush1.msra.mxu0 %v96
    %216 = vmatprep.subr.mxu0 0.0
    %217 = vmatpush2.msra.mxu0 0.0
    %218 = vmatprep.subr.mxu0 0.0
    %219 = vmatpush2.msra.mxu0 0.0
    %220 = vmatprep.subr.mxu0 0.0
    %221 = vmatpush2.msra.mxu0 0.0
    %222 = vmatprep.subr.mxu0 0.0
    %223 = vmatpush2.msra.mxu0 0.0
    %224 = vmatprep.subr.mxu0 0.0
    %225 = vmatpush2.msra.mxu0 0.0
    %226 = vmatprep.subr.mxu0 0.0
    %227 = vmatpush2.msra.mxu0 0.0
    %228 = vmatprep.subr.mxu0 0.0
    %229 = vmatpush2.msra.mxu0 0.0
    %230 = vmatprep.subr.mxu0 0.0
    %231 = vmatpush2.msra.mxu0 0.0
    %232 = vmatprep.subr.mxu0 0.0
    %233 = vmatpush2.msra.mxu0 0.0
    %234 = vmatprep.subr.mxu0 0.0
    %235 = vmatpush2.msra.mxu0 0.0
    %236 = vmatprep.subr.mxu0 0.0
    %237 = vmatpush2.msra.mxu0 0.0
    %238 = vmatprep.subr.mxu0 0.0
    %239 = vmatpush2.msra.mxu0 0.0
    %240 = vmatprep.subr.mxu0 0.0
    %241 = vmatpush2.msra.mxu0 0.0
    %242 = vmatprep.subr.mxu0 0.0
    %243 = vmatpush2.msra.mxu0 0.0
    %244 = vmatprep.subr.mxu0 0.0
    %245 = vmatpush2.msra.mxu0 0.0
    %246 = vmatprep.subr.mxu0 0.0
    %247 = vmatpush2.msra.mxu0 0.0
    %248 = vmatprep.mubr.f32.mxu0 0.0
    %249 = vmatmul.mubr.f32.gmra.mxu0 %v182
    %v250 = vpop.f32.mrf.mxu0
    %v251 = vadd.f32 %v176, %v250
    %v252 = vpop.f32.mrf.mxu0
    %v253 = vadd.f32 %v178, %v252
    %254 = vdwg.mxu0
    %v255 = vld [vmem:[%s4] sm:$0x3]
    %v257 = vlaneseq
    %v258 = vshrl.u32 %v257, 7
    %v259 = vsub.s32 0, %v258
    %v260 = vrot.slane %v255, %v259
    %v261 = vlaneseq
    %v262 = vshrl.u32 %v261, 7
    %v263 = vsub.s32 1, %v262
    %v264 = vrot.slane %v255, %v263
    %v267 = vadd.f32 %v251, %v260
    %v268 = vadd.f32 %v253, %v264
    %v269 = vmax.f32 %v267, 0.0
    %v270 = vmax.f32 %v268, 0.0
    %v271 = vld [vmem:[#allocation10] sm:$0xff]
    %v272 = vld [vmem:[#allocation10 + $0x8] sm:$0xff]
    %v273 = vld [vmem:[#allocation10 + $0x10] sm:$0xff]
    %v274 = vld [vmem:[#allocation10 + $0x18] sm:$0xff]
    %v275 = vld [vmem:[#allocation10 + $0x20] sm:$0xff]
    %v276 = vld [vmem:[#allocation10 + $0x28] sm:$0xff]
    %v277 = vld [vmem:[#allocation10 + $0x30] sm:$0xff]
    %v278 = vld [vmem:[#allocation10 + $0x38] sm:$0xff]
    %v279 = vld [vmem:[#allocation10 + $0x40] sm:$0xff]
    %v280 = vld [vmem:[#allocation10 + $0x48] sm:$0xff]
    %v281 = vld [vmem:[#allocation10 + $0x50] sm:$0xff]
    %v282 = vld [vmem:[#allocation10 + $0x58] sm:$0xff]
    %v283 = vld [vmem:[#allocation10 + $0x60] sm:$0xff]
    %v284 = vld [vmem:[#allocation10 + $0x68] sm:$0xff]
    %v285 = vld [vmem:[#allocation10 + $0x70] sm:$0xff]
    %v286 = vld [vmem:[#allocation10 + $0x78] sm:$0xff]
    %v287 = vld [vmem:[#allocation10 + $0x80] sm:$0xff]
    %v288 = vld [vmem:[#allocation10 + $0x88] sm:$0xff]
    %v289 = vld [vmem:[#allocation10 + $0x90] sm:$0xff]
    %v290 = vld [vmem:[#allocation10 + $0x98] sm:$0xff]
    %v291 = vld [vmem:[#allocation10 + $0xa0] sm:$0xff]
    %v292 = vld [vmem:[#allocation10 + $0xa8] sm:$0xff]
    %v293 = vld [vmem:[#allocation10 + $0xb0] sm:$0xff]
    %v294 = vld [vmem:[#allocation10 + $0xb8] sm:$0xff]
    %v295 = vld [vmem:[#allocation10 + $0xc0] sm:$0xff]
    %v296 = vld [vmem:[#allocation10 + $0xc8] sm:$0xff]
    %v297 = vld [vmem:[#allocation10 + $0xd0] sm:$0xff]
    %v298 = vld [vmem:[#allocation10 + $0xd8] sm:$0xff]
    %v299 = vld [vmem:[#allocation10 + $0xe0] sm:$0xff]
    %v300 = vld [vmem:[#allocation10 + $0xe8] sm:$0xff]
    %v301 = vld [vmem:[#allocation10 + $0xf0] sm:$0xff]
    %v302 = vld [vmem:[#allocation10 + $0xf8] sm:$0xff]
    %v303 = vld [vmem:[#allocation10 + $0x100] sm:$0xff]
    %v304 = vld [vmem:[#allocation10 + $0x108] sm:$0xff]
    %v305 = vld [vmem:[#allocation10 + $0x110] sm:$0xff]
    %v306 = vld [vmem:[#allocation10 + $0x118] sm:$0xff]
    %v307 = vld [vmem:[#allocation10 + $0x120] sm:$0xff]
    %v308 = vld [vmem:[#allocation10 + $0x128] sm:$0xff]
    %v309 = vld [vmem:[#allocation10 + $0x130] sm:$0xff]
    %v310 = vld [vmem:[#allocation10 + $0x138] sm:$0xff]
    %v311 = vld [vmem:[#allocation10 + $0x140] sm:$0xff]
    %v312 = vld [vmem:[#allocation10 + $0x148] sm:$0xff]
    %v313 = vld [vmem:[#allocation10 + $0x150] sm:$0xff]
    %v314 = vld [vmem:[#allocation10 + $0x158] sm:$0xff]
    %v315 = vld [vmem:[#allocation10 + $0x160] sm:$0xff]
    %v316 = vld [vmem:[#allocation10 + $0x168] sm:$0xff]
    %v317 = vld [vmem:[#allocation10 + $0x170] sm:$0xff]
    %v318 = vld [vmem:[#allocation10 + $0x178] sm:$0xff]
    %v319 = vld [vmem:[#allocation10 + $0x180] sm:$0xff]
    %v320 = vld [vmem:[#allocation10 + $0x188] sm:$0xff]
    %v321 = vld [vmem:[#allocation10 + $0x190] sm:$0xff]
    %v322 = vld [vmem:[#allocation10 + $0x198] sm:$0xff]
    %v323 = vld [vmem:[#allocation10 + $0x1a0] sm:$0xff]
    %v324 = vld [vmem:[#allocation10 + $0x1a8] sm:$0xff]
    %v325 = vld [vmem:[#allocation10 + $0x1b0] sm:$0xff]
    %v326 = vld [vmem:[#allocation10 + $0x1b8] sm:$0xff]
    %v327 = vld [vmem:[#allocation10 + $0x1c0] sm:$0xff]
    %v328 = vld [vmem:[#allocation10 + $0x1c8] sm:$0xff]
    %v329 = vld [vmem:[#allocation10 + $0x1d0] sm:$0xff]
    %v330 = vld [vmem:[#allocation10 + $0x1d8] sm:$0xff]
    %v331 = vld [vmem:[#allocation10 + $0x1e0] sm:$0xff]
    %v332 = vld [vmem:[#allocation10 + $0x1e8] sm:$0xff]
    %v333 = vld [vmem:[#allocation10 + $0x1f0] sm:$0xff]
    %v334 = vld [vmem:[#allocation10 + $0x1f8] sm:$0xff]
    %v335 = vld [vmem:[%s6] sm:$0x3]
    %v337 = vlaneseq
    %v338 = vshrl.u32 %v337, 7
    %v339 = vsub.s32 0, %v338
    %v340 = vrot.slane %v335, %v339
    %v341 = vlaneseq
    %v342 = vshrl.u32 %v341, 7
    %v343 = vsub.s32 1, %v342
    %v344 = vrot.slane %v335, %v343
    %347 = vmatprep.subr.mxu0 %v302
    %348 = vmatpush1.msra.mxu0 %v301
    %349 = vmatprep.subr.mxu0 %v300
    %350 = vmatpush1.msra.mxu0 %v299
    %351 = vmatprep.subr.mxu0 %v298
    %352 = vmatpush1.msra.mxu0 %v297
    %353 = vmatprep.subr.mxu0 %v296
    %354 = vmatpush1.msra.mxu0 %v295
    %355 = vmatprep.subr.mxu0 %v294
    %356 = vmatpush1.msra.mxu0 %v293
    %357 = vmatprep.subr.mxu0 %v292
    %358 = vmatpush1.msra.mxu0 %v291
    %359 = vmatprep.subr.mxu0 %v290
    %360 = vmatpush1.msra.mxu0 %v289
    %361 = vmatprep.subr.mxu0 %v288
    %362 = vmatpush1.msra.mxu0 %v287
    %363 = vmatprep.subr.mxu0 %v286
    %364 = vmatpush1.msra.mxu0 %v285
    %365 = vmatprep.subr.mxu0 %v284
    %366 = vmatpush1.msra.mxu0 %v283
    %367 = vmatprep.subr.mxu0 %v282
    %368 = vmatpush1.msra.mxu0 %v281
    %369 = vmatprep.subr.mxu0 %v280
    %370 = vmatpush1.msra.mxu0 %v279
    %371 = vmatprep.subr.mxu0 %v278
    %372 = vmatpush1.msra.mxu0 %v277
    %373 = vmatprep.subr.mxu0 %v276
    %374 = vmatpush1.msra.mxu0 %v275
    %375 = vmatprep.subr.mxu0 %v274
    %376 = vmatpush1.msra.mxu0 %v273
    %377 = vmatprep.subr.mxu0 %v272
    %378 = vmatpush1.msra.mxu0 %v271
    %379 = vmatprep.subr.mxu0 %v334
    %380 = vmatpush2.msra.mxu0 %v333
    %381 = vmatprep.subr.mxu0 %v332
    %382 = vmatpush2.msra.mxu0 %v331
    %383 = vmatprep.subr.mxu0 %v330
    %384 = vmatpush2.msra.mxu0 %v329
    %385 = vmatprep.subr.mxu0 %v328
    %386 = vmatpush2.msra.mxu0 %v327
    %387 = vmatprep.subr.mxu0 %v326
    %388 = vmatpush2.msra.mxu0 %v325
    %389 = vmatprep.subr.mxu0 %v324
    %390 = vmatpush2.msra.mxu0 %v323
    %391 = vmatprep.subr.mxu0 %v322
    %392 = vmatpush2.msra.mxu0 %v321
    %393 = vmatprep.subr.mxu0 %v320
    %394 = vmatpush2.msra.mxu0 %v319
    %395 = vmatprep.subr.mxu0 %v318
    %396 = vmatpush2.msra.mxu0 %v317
    %397 = vmatprep.subr.mxu0 %v316
    %398 = vmatpush2.msra.mxu0 %v315
    %399 = vmatprep.subr.mxu0 %v314
    %400 = vmatpush2.msra.mxu0 %v313
    %401 = vmatprep.subr.mxu0 %v312
    %402 = vmatpush2.msra.mxu0 %v311
    %403 = vmatprep.subr.mxu0 %v310
    %404 = vmatpush2.msra.mxu0 %v309
    %405 = vmatprep.subr.mxu0 %v308
    %406 = vmatpush2.msra.mxu0 %v307
    %407 = vmatprep.subr.mxu0 %v306
    %408 = vmatpush2.msra.mxu0 %v305
    %409 = vmatprep.subr.mxu0 %v304
    %410 = vmatpush2.msra.mxu0 %v303
    %411 = vmatprep.mubr.f32.mxu0 %v270
    %412 = vmatmul.mubr.f32.gmra.mxu0 %v269
    %v413 = vpop.f32.mrf.mxu0
    %v414 = vadd.f32 %v340, %v413
    %v415 = vpop.f32.mrf.mxu0
    %v416 = vadd.f32 %v344, %v415
    %417 = vdwg.mxu0
    %v418 = vmax.f32 %v414, 0.0
    %v419 = vmax.f32 %v416, 0.0
    %v420 = vld [vmem:[%s7] sm:$0x3]
    %v422 = vlaneseq
    %v423 = vshrl.u32 %v422, 7
    %v424 = vsub.s32 0, %v423
    %v425 = vrot.slane %v420, %v424
    %v426 = vlaneseq
    %v427 = vshrl.u32 %v426, 7
    %v428 = vsub.s32 1, %v427
    %v429 = vrot.slane %v420, %v428
    %v432 = vmul.f32 %v418, %v425
    %v433 = vmul.f32 %v419, %v429
    %v434 = vadd.f32 %v432, %v433
    %435 = vadd.xlane.f32.xlu0 %v434
    %v436 = vpop.xlane.xlu0 %435
    %s437 = sld [smem:[#allocation2]]
    %v438 = vstv %s437
    %v439 = vadd.f32 %v436, %v438
    %vm440 = vcmask 7168
    %441 = vst.msk [vmem:[%s9] sm:$0xff] %vm440, %v439
    // Predicated region
    $region58: #{tpu_custom_call.1} parent=1 // pred_check
      _
    $region59: #{tpu_custom_call.1} parent=1 // pred_check_branch
      %443 = sbr.rel (0) target = $region61
    $region60: #{tpu_custom_call.1} parent=1 // pred_region
      _
    $region61: #{tpu_custom_call.1} parent=1 // pred_fallthru
      _
    // Predicated region
    $region62: #{tpu_custom_call.1} parent=1 // pred_check
      _
    $region63: #{tpu_custom_call.1} parent=1 // pred_check_branch
      %445 = sbr.rel (0) target = $region65
    $region64: #{tpu_custom_call.1} parent=1 // pred_region
      _
    $region65: #{tpu_custom_call.1} parent=1 // pred_fallthru
      _
    %446 = vsyncpa [#allocation4], 1
    %447 = vsyncpa [#allocation6], 1
    %448 = vsyncpa [#allocation9], 1

</llo_original>
